<compile_context>
chip_gen: v6e
topology: v6e:2x2x1
jax: 0.10.0
libtpu: 0.0.40
codegen_flags: <defaults>
</compile_context>

<pallas_src>
import jax
import jax.numpy as jnp
from jax.experimental import pallas as pl
from jax.experimental.pallas import tpu as pltpu


LANE = 128


def _round_up(x, m):
    return (x + m - 1) // m * m


def _tpu_config():
    """Return (vmem_capacity_bytes, tensorcores_per_chip) with safe fallbacks."""
    kind = ""
    try:
        kind = jax.devices()[0].device_kind.lower()
    except Exception:
        pass
    # Fallback VMEM sizes: 64 MiB on v7x-class parts, 128 MiB on v5e/v6e.
    vmem = (64 << 20) if ("v7" in kind or "7x" in kind) else (128 << 20)
    try:
        vmem = int(pltpu.get_tpu_info().vmem_capacity_bytes)
    except Exception:
        pass
    cores = 2 if any(t in kind for t in ("v7", "7x", "v5p", "v4")) else 1
    return vmem, cores


def _pad2d(a, shape, dtype, fill=0.0):
    """Pad a 2-D array into `shape` with `fill`, casting to `dtype` in one pass."""
    if a.shape == tuple(shape) and a.dtype == dtype:
        return a
    return jnp.full(shape, fill, dtype).at[: a.shape[0], : a.shape[1]].set(
        a.astype(dtype))


def mlp_kernel(x_ref, w1_ref, b1_ref, w2_ref, b2_ref, o_ref):
    # x_ref:  (TM, Fp)   row tile of the (padded) input, MXU dtype
    # w1_ref: (Fp, Hp)   full first-layer weight (single-buffered, resident)
    # b1_ref: (1, Hp)    f32
    # w2_ref: (Hp, Cp)   full second-layer weight (single-buffered, resident)
    # b2_ref: (1, Cp)    f32; padded class lanes pre-filled with -1e30
    # o_ref:  (TM, Cp)   lane-dense f32 output tile
    x = x_ref[...]

    # Linear 1 + ReLU (MXU matmul, f32 accumulation; bias/ReLU in f32).
    h = jnp.dot(x, w1_ref[...], preferred_element_type=jnp.float32) + b1_ref[...]
    h = jnp.maximum(h, 0.0)

    # TODO(synk): F.dropout(training=self.training) is identity in eval mode;
    # training-mode dropout (random mask + 1/(1-p) scale) is not implemented.

    # Feed the second matmul in the weights' dtype (bf16 when use_bf16).
    h = h.astype(w2_ref.dtype)

    # Linear 2 (f32 accumulation).  Padded class lanes see logit == -1e30
    # (zero W2 columns + masked bias), so no extra masking is needed here.
    logits = jnp.dot(h, w2_ref[...], preferred_element_type=jnp.float32) + b2_ref[...]

    # log_softmax along dim=1 (last axis), max-shifted for stability.
    m = jnp.max(logits, axis=-1, keepdims=True)
    shifted = logits - m
    lse = jnp.log(jnp.sum(jnp.exp(shifted), axis=-1, keepdims=True))
    o_ref[...] = (shifted - lse).astype(o_ref.dtype)


def mlp_forward(x, w1, b1, w2, b2, *, use_bf16=None):
    """x: [N, F]; w1: [F, H]; b1: [1, H]; w2: [H, C]; b2: [1, C] -> [N, C] f32."""
    N, F = x.shape
    H = w1.shape[1]
    C = w2.shape[1]

    vmem_phys, n_cores = _tpu_config()

    if use_bf16 is None:
        # bf16 MXU inputs halve HBM traffic + resident-weight VMEM on every
        # current generation; accumulation and softmax math stay f32.
        use_bf16 = True
    mxu_dtype = jnp.bfloat16 if use_bf16 else jnp.float32
    bpe = 2 if use_bf16 else 4
    row_align = 16 if use_bf16 else 8  # bf16 packs two rows per sublane

    # Lane-dense padding of all contraction / lane dims (full vregs, unmasked
    # vst on the output).
    Fp = _round_up(F, LANE)
    Hp = _round_up(H, LANE)
    Cp = _round_up(C, LANE)

    # ---- VMEM budgeting -----------------------------------------------------
    # Weights + biases are single-buffered (Buffered(1), constant index_map).
    weight_bytes = Fp * Hp * bpe + Hp * Cp * bpe + (Hp + Cp) * 4
    # Per-output-row cost of one grid step: double-buffered x and out tiles
    # plus the f32 h / logits intermediates.
    per_row = 2 * Fp * bpe + 2 * Cp * 4 + (Hp + Cp) * 4
    budget = int(0.80 * vmem_phys)

    # ---- Row tile -------------------------------------------------------------
    if N <= 1024:
        tm = _round_up(N, row_align)          # whole problem in one grid step
    else:
        avail = budget - weight_bytes
        tm = 1024
        if avail > 0:
            tm = min(tm, (avail // per_row) // 256 * 256)
        tm = max(tm, 256)

    # ---- Grid / input padding -------------------------------------------------
    row_pad_free = (F == Fp) and (x.dtype == mxu_dtype) and (N % row_align == 0)
    if row_pad_free:
        # Layout already matches: no HBM round trip for padding; Pallas masks
        # the (possibly ragged) last row tile on the output store.
        xp = x
        rows = N
        ntiles = pl.cdiv(N, tm)
    else:
        Np = _round_up(N, tm)
        ntiles = Np // tm
        if n_cores > 1 and ntiles > 1 and ntiles % 2 == 1:
            # Only dual-TensorCore parts benefit from an even tile count.
            Np += tm
            ntiles += 1
        rows = Np
        # Single pass: zero-pad and cast directly into the MXU dtype.
        xp = _pad2d(x, (Np, Fp), mxu_dtype)

    w1p = _pad2d(w1, (Fp, Hp), mxu_dtype)
    w2p = _pad2d(w2, (Hp, Cp), mxu_dtype)
    b1p = _pad2d(b1, (1, Hp), jnp.float32)
    # Bake the class-lane mask into the bias: padded W2 columns are zero, so
    # padded-lane logits equal b2p there and -1e30 removes them from softmax.
    b2p = _pad2d(b2, (1, Cp), jnp.float32, fill=-1e30)

    # ---- VMEM limit -----------------------------------------------------------
    need = weight_bytes + tm * per_row
    cap = max(vmem_phys - (8 << 20), 32 << 20)      # headroom under physical
    vmem_limit = min(max(int(1.3 * need), 32 << 20), cap)
    if need > vmem_limit:
        # TODO(synk): F/H too large for resident weights -> needs the
        # K-reduction grid axis described at the top of this file.
        vmem_limit = cap

    cost = pl.CostEstimate(
        flops=2 * rows * (Fp * Hp + Hp * Cp),
        transcendentals=rows * Cp,
        bytes_accessed=(rows * Fp * bpe + Fp * Hp * bpe + Hp * Cp * bpe
                        + (Hp + Cp) * 4 + rows * Cp * 4),
    )

    out_p = pl.pallas_call(
        mlp_kernel,
        out_shape=jax.ShapeDtypeStruct((rows, Cp), jnp.float32),
        grid_spec=pltpu.PrefetchScalarGridSpec(
            num_scalar_prefetch=0,
            grid=(ntiles,),
            in_specs=[
                pl.BlockSpec((tm, Fp), lambda i: (i, 0)),          # x row tile
                pl.BlockSpec((Fp, Hp), lambda i: (0, 0),           # W1 resident
                             pipeline_mode=pl.Buffered(1)),
                pl.BlockSpec((1, Hp), lambda i: (0, 0),            # b1 resident
                             pipeline_mode=pl.Buffered(1)),
                pl.BlockSpec((Hp, Cp), lambda i: (0, 0),           # W2 resident
                             pipeline_mode=pl.Buffered(1)),
                pl.BlockSpec((1, Cp), lambda i: (0, 0),            # b2 resident
                             pipeline_mode=pl.Buffered(1)),
            ],
            out_specs=pl.BlockSpec((tm, Cp), lambda i: (i, 0)),    # lane-dense
        ),
        compiler_params=pltpu.CompilerParams(
            dimension_semantics=("parallel",),
            vmem_limit_bytes=vmem_limit,
        ),
        cost_estimate=cost,
    )(xp, w1p, b1p, w2p, b2p)

    # Drop row / class padding.
    return out_p[:N, :C]


def init_params(key, nfeature, nhid, nclass):
    """Deterministic init mimicking torch.nn.Linear (uniform(-1/sqrt(fan_in)))."""
    k1, k2, k3, k4 = jax.random.split(key, 4)
    lim1 = 1.0 / jnp.sqrt(nfeature)
    lim2 = 1.0 / jnp.sqrt(nhid)
    w1 = jax.random.uniform(k1, (nfeature, nhid), jnp.float32, -lim1, lim1)
    b1 = jax.random.uniform(k2, (1, nhid), jnp.float32, -lim1, lim1)
    w2 = jax.random.uniform(k3, (nhid, nclass), jnp.float32, -lim2, lim2)
    b2 = jax.random.uniform(k4, (1, nclass), jnp.float32, -lim2, lim2)
    return w1, b1, w2, b2


if __name__ == "__main__":
    # Small shapes consistent with the module: N nodes, nfeature -> nhid -> nclass
    N, nfeature, nhid, nclass = 64, 32, 64, 16

    key = jax.random.PRNGKey(0)
    kx, kp = jax.random.split(key)
    x = jax.random.normal(kx, (N, nfeature), jnp.float32)
    w1, b1, w2, b2 = init_params(kp, nfeature, nhid, nclass)

    # Pure-JAX reference (eval-mode dropout = identity).
    h_ref = jnp.maximum(x @ w1 + b1, 0.0)
    ref = jax.nn.log_softmax(h_ref @ w2 + b2, axis=1)

    # f32 MXU path: tight numerical check.
    out_f32 = jax.block_until_ready(mlp_forward(x, w1, b1, w2, b2, use_bf16=False))
    assert out_f32.shape == (N, nclass)
    assert jnp.allclose(out_f32, ref, atol=1e-4, rtol=1e-4)

    # Default path (bf16 MXU inputs, f32 accumulation): loose check.
    out_bf16 = jax.block_until_ready(mlp_forward(x, w1, b1, w2, b2))
    assert out_bf16.shape == (N, nclass)
    assert jnp.allclose(out_bf16, ref, atol=5e-2, rtol=5e-2)

    print("KERNEL_OK")
</pallas_src>

<mosaic_0001>
module attributes {stable_mosaic.version = 11 : i64} {
  func.func @mlp_kernel(%arg0: i32, %arg1: memref<64x128xf32, #tpu.memory_space<vmem>>, %arg2: memref<128x128xf32, #tpu.memory_space<vmem>>, %arg3: memref<1x128xf32, #tpu.memory_space<vmem>>, %arg4: memref<128x128xf32, #tpu.memory_space<vmem>>, %arg5: memref<1x128xf32, #tpu.memory_space<vmem>>, %arg6: memref<64x128xf32, #tpu.memory_space<vmem>>) attributes {dimension_semantics = [#tpu.dimension_semantics<parallel>], iteration_bounds = array<i64: 1>, scalar_prefetch = 0 : i64, scratch_operands = 0 : i64, tpu.core_type = #tpu.core_type<tc>, window_params = [{transform_indices = @transform_0, window_bounds = array<i64: 64, 128>}, {pipeline_mode = #tpu.pipeline_mode<synchronous>, transform_indices = @transform_1, window_bounds = array<i64: 128, 128>}, {pipeline_mode = #tpu.pipeline_mode<synchronous>, transform_indices = @transform_2, window_bounds = array<i64: 1, 128>}, {pipeline_mode = #tpu.pipeline_mode<synchronous>, transform_indices = @transform_3, window_bounds = array<i64: 128, 128>}, {pipeline_mode = #tpu.pipeline_mode<synchronous>, transform_indices = @transform_4, window_bounds = array<i64: 1, 128>}, {transform_indices = @transform_5, window_bounds = array<i64: 64, 128>}]} {
    %c0 = arith.constant 0 : index
    %c0_0 = arith.constant 0 : index
    %0 = vector.load %arg1[%c0, %c0_0] : memref<64x128xf32, #tpu.memory_space<vmem>>, vector<64x128xf32>
    %c0_1 = arith.constant 0 : index
    %c0_2 = arith.constant 0 : index
    %1 = vector.load %arg2[%c0_1, %c0_2] : memref<128x128xf32, #tpu.memory_space<vmem>>, vector<128x128xf32>
    %cst = arith.constant dense<0.000000e+00> : vector<64x128xf32>
    %2 = tpu.matmul %0, %1, %cst {dimension_numbers = #tpu.dot_dimension_numbers<[1], [0], [0], [1], [0, 0, 1, 1], [], []>} : vector<64x128xf32>, vector<128x128xf32>, vector<64x128xf32> -> vector<64x128xf32>
    %c0_3 = arith.constant 0 : index
    %c0_4 = arith.constant 0 : index
    %3 = vector.load %arg3[%c0_3, %c0_4] : memref<1x128xf32, #tpu.memory_space<vmem>>, vector<1x128xf32>
    %4 = vector.broadcast %3 : vector<1x128xf32> to vector<64x128xf32>
    %5 = arith.addf %2, %4 : vector<64x128xf32>
    %cst_5 = arith.constant 0.000000e+00 : f32
    %6 = vector.broadcast %cst_5 : f32 to vector<64x128xf32>
    %7 = arith.maximumf %5, %6 : vector<64x128xf32>
    %c0_6 = arith.constant 0 : index
    %c0_7 = arith.constant 0 : index
    %8 = vector.load %arg4[%c0_6, %c0_7] : memref<128x128xf32, #tpu.memory_space<vmem>>, vector<128x128xf32>
    %cst_8 = arith.constant dense<0.000000e+00> : vector<64x128xf32>
    %9 = tpu.matmul %7, %8, %cst_8 {dimension_numbers = #tpu.dot_dimension_numbers<[1], [0], [0], [1], [0, 0, 1, 1], [], []>} : vector<64x128xf32>, vector<128x128xf32>, vector<64x128xf32> -> vector<64x128xf32>
    %c0_9 = arith.constant 0 : index
    %c0_10 = arith.constant 0 : index
    %10 = vector.load %arg5[%c0_9, %c0_10] : memref<1x128xf32, #tpu.memory_space<vmem>>, vector<1x128xf32>
    %11 = vector.broadcast %10 : vector<1x128xf32> to vector<64x128xf32>
    %12 = arith.addf %9, %11 : vector<64x128xf32>
    %cst_11 = arith.constant dense<0xFF800000> : vector<64xf32>
    %13 = vector.multi_reduction <maximumf>, %12, %cst_11 [1] : vector<64x128xf32> to vector<64xf32>
    %14 = vector.shape_cast %13 : vector<64xf32> to vector<64x1xf32>
    %15 = vector.broadcast %14 : vector<64x1xf32> to vector<64x128xf32>
    %16 = arith.subf %12, %15 : vector<64x128xf32>
    %17 = math.exp %16 : vector<64x128xf32>
    %cst_12 = arith.constant dense<0.000000e+00> : vector<64xf32>
    %18 = vector.multi_reduction <add>, %17, %cst_12 [1] : vector<64x128xf32> to vector<64xf32>
    %19 = vector.shape_cast %18 : vector<64xf32> to vector<64x1xf32>
    %20 = math.log %19 : vector<64x1xf32>
    %21 = vector.broadcast %20 : vector<64x1xf32> to vector<64x128xf32>
    %22 = arith.subf %16, %21 : vector<64x128xf32>
    %c0_13 = arith.constant 0 : index
    %c0_14 = arith.constant 0 : index
    %23 = vector.load %arg6[%c0_13, %c0_14] : memref<64x128xf32, #tpu.memory_space<vmem>>, vector<64x128xf32>
    tpu.vector_store %arg6[%c0_13, %c0_14], %22 {strides = array<i32>} : memref<64x128xf32, #tpu.memory_space<vmem>>, vector<64x128xf32>,
    return
  }
  func.func @transform_0(%arg0: i32) -> (i32, i32) {
    %c0_i32 = arith.constant 0 : i32
    %c0_i32_0 = arith.constant 0 : i32
    return %arg0, %c0_i32 : i32, i32
  }
  func.func @transform_1(%arg0: i32) -> (i32, i32) {
    %c0_i32 = arith.constant 0 : i32
    %c0_i32_0 = arith.constant 0 : i32
    %c0_i32_1 = arith.constant 0 : i32
    return %c0_i32, %c0_i32_0 : i32, i32
  }
  func.func @transform_2(%arg0: i32) -> (i32, i32) {
    %c0_i32 = arith.constant 0 : i32
    %c0_i32_0 = arith.constant 0 : i32
    %c0_i32_1 = arith.constant 0 : i32
    return %c0_i32, %c0_i32_0 : i32, i32
  }
  func.func @transform_3(%arg0: i32) -> (i32, i32) {
    %c0_i32 = arith.constant 0 : i32
    %c0_i32_0 = arith.constant 0 : i32
    %c0_i32_1 = arith.constant 0 : i32
    return %c0_i32, %c0_i32_0 : i32, i32
  }
  func.func @transform_4(%arg0: i32) -> (i32, i32) {
    %c0_i32 = arith.constant 0 : i32
    %c0_i32_0 = arith.constant 0 : i32
    %c0_i32_1 = arith.constant 0 : i32
    return %c0_i32, %c0_i32_0 : i32, i32
  }
  func.func @transform_5(%arg0: i32) -> (i32, i32) {
    %c0_i32 = arith.constant 0 : i32
    %c0_i32_0 = arith.constant 0 : i32
    return %arg0, %c0_i32 : i32, i32
  }
}

</mosaic_0001>

<llo_original>
// kernel: tpu_custom_call.1
$region0: #{tpu_custom_call.1}
  #allocation0 [shape = 'u32[]', space=smem, size = 0x4, offset = 0x4, fixed_abs, tag = 'smem constant byte address 0x4 - core index']
  #allocation1 [shape = 'u32[144,128]{1,0:T(1,128)}', space=vmem, size = 0x12000, scoped, tag = 'internal scratch']
  %s0 = inlined_call_operand.hbm [shape: f32[64,128], index: 0, kind: input, shape index: {}]
  %s1 = inlined_call_operand.hbm [shape: f32[128,128], index: 1, kind: input, shape index: {}]
  %s2 = inlined_call_operand.vmem [shape: f32[1,128], index: 2, kind: input, shape index: {}]
  %s3 = inlined_call_operand.hbm [shape: f32[128,128], index: 3, kind: input, shape index: {}]
  %s4 = inlined_call_operand.vmem [shape: f32[1,128], index: 4, kind: input, shape index: {}]
  %s5 = inlined_call_operand.hbm [shape: f32[64,128], index: 5, kind: output, shape index: {}]
  %s6 = sld [smem:[#allocation0]]
  $region42: #{tpu_custom_call.1} parent=0
    _
  %s8 = ssub.s32 1, %s6
  %s9 = scalar_select 0, %s8, %s6
  $region1: #{tpu_custom_call.1} parent=0
    #allocation2 [shape = 'u8[32768]{0}', space=vmem, size = 0x8000, scoped, tag = 'input window, operand 0, single buffered']
    #allocation3 [shape = 's32[1]{0}', space=sflag, size = 0x4, scoped, tag = 'scoped memory for tpu_custom_call.1']
    #allocation4 [shape = 's32[1]{0}', space=sflag, size = 0x4, scoped, tag = 'scoped memory for tpu_custom_call.1']
    #allocation5 [shape = 'u8[65536]{0}', space=vmem, size = 0x10000, scoped, tag = 'input window, operand 1, single buffered']
    #allocation6 [shape = 's32[1]{0}', space=sflag, size = 0x4, scoped, tag = 'scoped memory for tpu_custom_call.1']
    #allocation7 [shape = 'u8[65536]{0}', space=vmem, size = 0x10000, scoped, tag = 'input window, operand 3, single buffered']
    #allocation8 [shape = 'u8[32768]{0}', space=vmem, size = 0x8000, scoped, tag = 'output window, operand 0, single buffered']
    %10 = vsyncpa [#allocation3], 0
    %11 = vsyncpa [#allocation6], 0
    %12 = vsyncpa [#allocation4], 0
    // Predicated region
    $region2: #{tpu_custom_call.1} parent=1 // pred_check
      _
    $region3: #{tpu_custom_call.1} parent=1 // pred_check_branch
      %14 = sbr.rel (0) target = $region5
    $region4: #{tpu_custom_call.1} parent=1 // pred_region
      %s16 = ssub.s32 1024, 1024
      %17 = vsyncadd [#allocation3], %s16
      %s18 = sshll.u32 [#allocation2], 4
      %s19 = int_to_ptr.vmem [resolvable:$true] %s18
      %24 = dma.hbm_to_vmem [thread:$0]  %s0, 1024, %s19, [#allocation3], 128, 128, 8
    $region5: #{tpu_custom_call.1} parent=1 // pred_fallthru
      _
    // Predicated region
    $region6: #{tpu_custom_call.1} parent=1 // pred_check
      _
    $region7: #{tpu_custom_call.1} parent=1 // pred_check_branch
      %26 = sbr.rel (0) target = $region9
    $region8: #{tpu_custom_call.1} parent=1 // pred_region
      %s28 = ssub.s32 2048, 2048
      %29 = vsyncadd [#allocation6], %s28
      %s30 = sshll.u32 [#allocation5], 4
      %s31 = int_to_ptr.vmem [resolvable:$true] %s30
      %36 = dma.hbm_to_vmem [thread:$0]  %s1, 2048, %s31, [#allocation6], 128, 128, 8
    $region9: #{tpu_custom_call.1} parent=1 // pred_fallthru
      _
    // Predicated region
    $region10: #{tpu_custom_call.1} parent=1 // pred_check
      _
    $region11: #{tpu_custom_call.1} parent=1 // pred_check_branch
      %38 = sbr.rel (0) target = $region13
    $region12: #{tpu_custom_call.1} parent=1 // pred_region
      _
    $region13: #{tpu_custom_call.1} parent=1 // pred_fallthru
      _
    // Predicated region
    $region14: #{tpu_custom_call.1} parent=1 // pred_check
      _
    $region15: #{tpu_custom_call.1} parent=1 // pred_check_branch
      %40 = sbr.rel (0) target = $region17
    $region16: #{tpu_custom_call.1} parent=1 // pred_region
      %s42 = ssub.s32 2048, 2048
      %43 = vsyncadd [#allocation6], %s42
      %s44 = sshll.u32 [#allocation7], 4
      %s45 = int_to_ptr.vmem [resolvable:$true] %s44
      %50 = dma.hbm_to_vmem [thread:$0]  %s3, 2048, %s45, [#allocation6], 128, 128, 8
    $region17: #{tpu_custom_call.1} parent=1 // pred_fallthru
      _
    // Predicated region
    $region18: #{tpu_custom_call.1} parent=1 // pred_check
      _
    $region19: #{tpu_custom_call.1} parent=1 // pred_check_branch
      %52 = sbr.rel (0) target = $region21
    $region20: #{tpu_custom_call.1} parent=1 // pred_region
      _
    $region21: #{tpu_custom_call.1} parent=1 // pred_fallthru
      _
    // Predicated region
    $region22: #{tpu_custom_call.1} parent=1 // pred_check
      _
    $region23: #{tpu_custom_call.1} parent=1 // pred_check_branch
      %54 = sbr.rel (0) target = $region25
    $region24: #{tpu_custom_call.1} parent=1 // pred_region
      %55 = dma.done [#allocation3], 1024
    $region25: #{tpu_custom_call.1} parent=1 // pred_fallthru
      _
    // Predicated region
    $region26: #{tpu_custom_call.1} parent=1 // pred_check
      _
    $region27: #{tpu_custom_call.1} parent=1 // pred_check_branch
      %57 = sbr.rel (0) target = $region29
    $region28: #{tpu_custom_call.1} parent=1 // pred_region
      %58 = dma.done [#allocation6], 2048
    $region29: #{tpu_custom_call.1} parent=1 // pred_fallthru
      _
    // Predicated region
    $region30: #{tpu_custom_call.1} parent=1 // pred_check
      _
    $region31: #{tpu_custom_call.1} parent=1 // pred_check_branch
      %60 = sbr.rel (0) target = $region33
    $region32: #{tpu_custom_call.1} parent=1 // pred_region
      %61 = dma.done [#allocation6], 2048
    $region33: #{tpu_custom_call.1} parent=1 // pred_fallthru
      _
    %v62 = vld [vmem:[#allocation2] sm:$0xff]
    %v63 = vld [vmem:[#allocation2 + $0x8] sm:$0xff]
    %v64 = vld [vmem:[#allocation2 + $0x10] sm:$0xff]
    %v65 = vld [vmem:[#allocation2 + $0x18] sm:$0xff]
    %v66 = vld [vmem:[#allocation2 + $0x20] sm:$0xff]
    %v67 = vld [vmem:[#allocation2 + $0x28] sm:$0xff]
    %v68 = vld [vmem:[#allocation2 + $0x30] sm:$0xff]
    %v69 = vld [vmem:[#allocation2 + $0x38] sm:$0xff]
    %v70 = vld [vmem:[#allocation5] sm:$0xff]
    %v71 = vld [vmem:[#allocation5 + $0x8] sm:$0xff]
    %v72 = vld [vmem:[#allocation5 + $0x10] sm:$0xff]
    %v73 = vld [vmem:[#allocation5 + $0x18] sm:$0xff]
    %v74 = vld [vmem:[#allocation5 + $0x20] sm:$0xff]
    %v75 = vld [vmem:[#allocation5 + $0x28] sm:$0xff]
    %v76 = vld [vmem:[#allocation5 + $0x30] sm:$0xff]
    %v77 = vld [vmem:[#allocation5 + $0x38] sm:$0xff]
    %v78 = vld [vmem:[#allocation5 + $0x40] sm:$0xff]
    %v79 = vld [vmem:[#allocation5 + $0x48] sm:$0xff]
    %v80 = vld [vmem:[#allocation5 + $0x50] sm:$0xff]
    %v81 = vld [vmem:[#allocation5 + $0x58] sm:$0xff]
    %v82 = vld [vmem:[#allocation5 + $0x60] sm:$0xff]
    %v83 = vld [vmem:[#allocation5 + $0x68] sm:$0xff]
    %v84 = vld [vmem:[#allocation5 + $0x70] sm:$0xff]
    %v85 = vld [vmem:[#allocation5 + $0x78] sm:$0xff]
    %v86 = vld [vmem:[%s2] sm:$0x1]
    %v88 = vlaneseq
    %v89 = vshrl.u32 %v88, 7
    %v90 = vsub.s32 0, %v89
    %v91 = vrot.slane %v86, %v90
    %93 = vmatprep.subr.mxu0 0.0
    %94 = vmatpush1.msra.mxu0 %v85
    %95 = vmatprep.subr.mxu0 0.0
    %96 = vmatpush1.msra.mxu0 %v84
    %97 = vmatprep.subr.mxu0 0.0
    %98 = vmatpush1.msra.mxu0 %v83
    %99 = vmatprep.subr.mxu0 0.0
    %100 = vmatpush1.msra.mxu0 %v82
    %101 = vmatprep.subr.mxu0 0.0
    %102 = vmatpush1.msra.mxu0 %v81
    %103 = vmatprep.subr.mxu0 0.0
    %104 = vmatpush1.msra.mxu0 %v80
    %105 = vmatprep.subr.mxu0 0.0
    %106 = vmatpush1.msra.mxu0 %v79
    %107 = vmatprep.subr.mxu0 0.0
    %108 = vmatpush1.msra.mxu0 %v78
    %109 = vmatprep.subr.mxu0 0.0
    %110 = vmatpush1.msra.mxu0 %v77
    %111 = vmatprep.subr.mxu0 0.0
    %112 = vmatpush1.msra.mxu0 %v76
    %113 = vmatprep.subr.mxu0 0.0
    %114 = vmatpush1.msra.mxu0 %v75
    %115 = vmatprep.subr.mxu0 0.0
    %116 = vmatpush1.msra.mxu0 %v74
    %117 = vmatprep.subr.mxu0 0.0
    %118 = vmatpush1.msra.mxu0 %v73
    %119 = vmatprep.subr.mxu0 0.0
    %120 = vmatpush1.msra.mxu0 %v72
    %121 = vmatprep.subr.mxu0 0.0
    %122 = vmatpush1.msra.mxu0 %v71
    %123 = vmatprep.subr.mxu0 0.0
    %124 = vmatpush1.msra.mxu0 %v70
    %125 = vmatprep.subr.mxu0 0.0
    %126 = vmatpush2.msra.mxu0 0.0
    %127 = vmatprep.subr.mxu0 0.0
    %128 = vmatpush2.msra.mxu0 0.0
    %129 = vmatprep.subr.mxu0 0.0
    %130 = vmatpush2.msra.mxu0 0.0
    %131 = vmatprep.subr.mxu0 0.0
    %132 = vmatpush2.msra.mxu0 0.0
    %133 = vmatprep.subr.mxu0 0.0
    %134 = vmatpush2.msra.mxu0 0.0
    %135 = vmatprep.subr.mxu0 0.0
    %136 = vmatpush2.msra.mxu0 0.0
    %137 = vmatprep.subr.mxu0 0.0
    %138 = vmatpush2.msra.mxu0 0.0
    %139 = vmatprep.subr.mxu0 0.0
    %140 = vmatpush2.msra.mxu0 0.0
    %141 = vmatprep.subr.mxu0 0.0
    %142 = vmatpush2.msra.mxu0 0.0
    %143 = vmatprep.subr.mxu0 0.0
    %144 = vmatpush2.msra.mxu0 0.0
    %145 = vmatprep.subr.mxu0 0.0
    %146 = vmatpush2.msra.mxu0 0.0
    %147 = vmatprep.subr.mxu0 0.0
    %148 = vmatpush2.msra.mxu0 0.0
    %149 = vmatprep.subr.mxu0 0.0
    %150 = vmatpush2.msra.mxu0 0.0
    %151 = vmatprep.subr.mxu0 0.0
    %152 = vmatpush2.msra.mxu0 0.0
    %153 = vmatprep.subr.mxu0 0.0
    %154 = vmatpush2.msra.mxu0 0.0
    %155 = vmatprep.subr.mxu0 0.0
    %156 = vmatpush2.msra.mxu0 0.0
    %157 = vmatprep.mubr.f32.mxu0 0.0
    %158 = vmatmul.mubr.f32.gmra.mxu0 %v62
    %v159 = vpop.f32.mrf.mxu0
    %v160 = vadd.f32 %v91, %v159
    %v161 = vpop.f32.mrf.mxu0
    %162 = vmatprep.mubr.f32.mxu0 0.0
    %163 = vmatmul.mubr.f32.gmra.mxu0 %v63
    %v164 = vpop.f32.mrf.mxu0
    %v165 = vadd.f32 %v91, %v164
    %v166 = vpop.f32.mrf.mxu0
    %167 = vmatprep.mubr.f32.mxu0 0.0
    %168 = vmatmul.mubr.f32.gmra.mxu0 %v64
    %v169 = vpop.f32.mrf.mxu0
    %v170 = vadd.f32 %v91, %v169
    %v171 = vpop.f32.mrf.mxu0
    %172 = vmatprep.mubr.f32.mxu0 0.0
    %173 = vmatmul.mubr.f32.gmra.mxu0 %v65
    %v174 = vpop.f32.mrf.mxu0
    %v175 = vadd.f32 %v91, %v174
    %v176 = vpop.f32.mrf.mxu0
    %177 = vmatprep.mubr.f32.mxu0 0.0
    %178 = vmatmul.mubr.f32.gmra.mxu0 %v66
    %v179 = vpop.f32.mrf.mxu0
    %v180 = vadd.f32 %v91, %v179
    %v181 = vpop.f32.mrf.mxu0
    %182 = vmatprep.mubr.f32.mxu0 0.0
    %183 = vmatmul.mubr.f32.gmra.mxu0 %v67
    %v184 = vpop.f32.mrf.mxu0
    %v185 = vadd.f32 %v91, %v184
    %v186 = vpop.f32.mrf.mxu0
    %187 = vmatprep.mubr.f32.mxu0 0.0
    %188 = vmatmul.mubr.f32.gmra.mxu0 %v68
    %v189 = vpop.f32.mrf.mxu0
    %v190 = vadd.f32 %v91, %v189
    %v191 = vpop.f32.mrf.mxu0
    %192 = vmatprep.mubr.f32.mxu0 0.0
    %193 = vmatmul.mubr.f32.gmra.mxu0 %v69
    %v194 = vpop.f32.mrf.mxu0
    %v195 = vadd.f32 %v91, %v194
    %v196 = vpop.f32.mrf.mxu0
    %197 = vdwg.mxu0
    %v198 = vmax.f32 %v160, 0.0
    %v199 = vmax.f32 %v165, 0.0
    %v200 = vmax.f32 %v170, 0.0
    %v201 = vmax.f32 %v175, 0.0
    %v202 = vmax.f32 %v180, 0.0
    %v203 = vmax.f32 %v185, 0.0
    %v204 = vmax.f32 %v190, 0.0
    %v205 = vmax.f32 %v195, 0.0
    %v206 = vld [vmem:[#allocation7] sm:$0xff]
    %v207 = vld [vmem:[#allocation7 + $0x8] sm:$0xff]
    %v208 = vld [vmem:[#allocation7 + $0x10] sm:$0xff]
    %v209 = vld [vmem:[#allocation7 + $0x18] sm:$0xff]
    %v210 = vld [vmem:[#allocation7 + $0x20] sm:$0xff]
    %v211 = vld [vmem:[#allocation7 + $0x28] sm:$0xff]
    %v212 = vld [vmem:[#allocation7 + $0x30] sm:$0xff]
    %v213 = vld [vmem:[#allocation7 + $0x38] sm:$0xff]
    %v214 = vld [vmem:[#allocation7 + $0x40] sm:$0xff]
    %v215 = vld [vmem:[#allocation7 + $0x48] sm:$0xff]
    %v216 = vld [vmem:[#allocation7 + $0x50] sm:$0xff]
    %v217 = vld [vmem:[#allocation7 + $0x58] sm:$0xff]
    %v218 = vld [vmem:[#allocation7 + $0x60] sm:$0xff]
    %v219 = vld [vmem:[#allocation7 + $0x68] sm:$0xff]
    %v220 = vld [vmem:[#allocation7 + $0x70] sm:$0xff]
    %v221 = vld [vmem:[#allocation7 + $0x78] sm:$0xff]
    %v222 = vld [vmem:[%s4] sm:$0x1]
    %v224 = vlaneseq
    %v225 = vshrl.u32 %v224, 7
    %v226 = vsub.s32 0, %v225
    %v227 = vrot.slane %v222, %v226
    %229 = vmatprep.subr.mxu0 0.0
    %230 = vmatpush1.msra.mxu0 %v221
    %231 = vmatprep.subr.mxu0 0.0
    %232 = vmatpush1.msra.mxu0 %v220
    %233 = vmatprep.subr.mxu0 0.0
    %234 = vmatpush1.msra.mxu0 %v219
    %235 = vmatprep.subr.mxu0 0.0
    %236 = vmatpush1.msra.mxu0 %v218
    %237 = vmatprep.subr.mxu0 0.0
    %238 = vmatpush1.msra.mxu0 %v217
    %239 = vmatprep.subr.mxu0 0.0
    %240 = vmatpush1.msra.mxu0 %v216
    %241 = vmatprep.subr.mxu0 0.0
    %242 = vmatpush1.msra.mxu0 %v215
    %243 = vmatprep.subr.mxu0 0.0
    %244 = vmatpush1.msra.mxu0 %v214
    %245 = vmatprep.subr.mxu0 0.0
    %246 = vmatpush1.msra.mxu0 %v213
    %247 = vmatprep.subr.mxu0 0.0
    %248 = vmatpush1.msra.mxu0 %v212
    %249 = vmatprep.subr.mxu0 0.0
    %250 = vmatpush1.msra.mxu0 %v211
    %251 = vmatprep.subr.mxu0 0.0
    %252 = vmatpush1.msra.mxu0 %v210
    %253 = vmatprep.subr.mxu0 0.0
    %254 = vmatpush1.msra.mxu0 %v209
    %255 = vmatprep.subr.mxu0 0.0
    %256 = vmatpush1.msra.mxu0 %v208
    %257 = vmatprep.subr.mxu0 0.0
    %258 = vmatpush1.msra.mxu0 %v207
    %259 = vmatprep.subr.mxu0 0.0
    %260 = vmatpush1.msra.mxu0 %v206
    %261 = vmatprep.subr.mxu0 0.0
    %262 = vmatpush2.msra.mxu0 0.0
    %263 = vmatprep.subr.mxu0 0.0
    %264 = vmatpush2.msra.mxu0 0.0
    %265 = vmatprep.subr.mxu0 0.0
    %266 = vmatpush2.msra.mxu0 0.0
    %267 = vmatprep.subr.mxu0 0.0
    %268 = vmatpush2.msra.mxu0 0.0
    %269 = vmatprep.subr.mxu0 0.0
    %270 = vmatpush2.msra.mxu0 0.0
    %271 = vmatprep.subr.mxu0 0.0
    %272 = vmatpush2.msra.mxu0 0.0
    %273 = vmatprep.subr.mxu0 0.0
    %274 = vmatpush2.msra.mxu0 0.0
    %275 = vmatprep.subr.mxu0 0.0
    %276 = vmatpush2.msra.mxu0 0.0
    %277 = vmatprep.subr.mxu0 0.0
    %278 = vmatpush2.msra.mxu0 0.0
    %279 = vmatprep.subr.mxu0 0.0
    %280 = vmatpush2.msra.mxu0 0.0
    %281 = vmatprep.subr.mxu0 0.0
    %282 = vmatpush2.msra.mxu0 0.0
    %283 = vmatprep.subr.mxu0 0.0
    %284 = vmatpush2.msra.mxu0 0.0
    %285 = vmatprep.subr.mxu0 0.0
    %286 = vmatpush2.msra.mxu0 0.0
    %287 = vmatprep.subr.mxu0 0.0
    %288 = vmatpush2.msra.mxu0 0.0
    %289 = vmatprep.subr.mxu0 0.0
    %290 = vmatpush2.msra.mxu0 0.0
    %291 = vmatprep.subr.mxu0 0.0
    %292 = vmatpush2.msra.mxu0 0.0
    %293 = vmatprep.mubr.f32.mxu0 0.0
    %294 = vmatmul.mubr.f32.gmra.mxu0 %v198
    %v295 = vpop.f32.mrf.mxu0
    %v296 = vadd.f32 %v227, %v295
    %v297 = vpop.f32.mrf.mxu0
    %298 = vmatprep.mubr.f32.mxu0 0.0
    %299 = vmatmul.mubr.f32.gmra.mxu0 %v199
    %v300 = vpop.f32.mrf.mxu0
    %v301 = vadd.f32 %v227, %v300
    %v302 = vpop.f32.mrf.mxu0
    %303 = vmatprep.mubr.f32.mxu0 0.0
    %304 = vmatmul.mubr.f32.gmra.mxu0 %v200
    %v305 = vpop.f32.mrf.mxu0
    %v306 = vadd.f32 %v227, %v305
    %v307 = vpop.f32.mrf.mxu0
    %308 = vmatprep.mubr.f32.mxu0 0.0
    %309 = vmatmul.mubr.f32.gmra.mxu0 %v201
    %v310 = vpop.f32.mrf.mxu0
    %v311 = vadd.f32 %v227, %v310
    %v312 = vpop.f32.mrf.mxu0
    %313 = vmatprep.mubr.f32.mxu0 0.0
    %314 = vmatmul.mubr.f32.gmra.mxu0 %v202
    %v315 = vpop.f32.mrf.mxu0
    %v316 = vadd.f32 %v227, %v315
    %v317 = vpop.f32.mrf.mxu0
    %318 = vmatprep.mubr.f32.mxu0 0.0
    %319 = vmatmul.mubr.f32.gmra.mxu0 %v203
    %v320 = vpop.f32.mrf.mxu0
    %v321 = vadd.f32 %v227, %v320
    %v322 = vpop.f32.mrf.mxu0
    %323 = vmatprep.mubr.f32.mxu0 0.0
    %324 = vmatmul.mubr.f32.gmra.mxu0 %v204
    %v325 = vpop.f32.mrf.mxu0
    %v326 = vadd.f32 %v227, %v325
    %v327 = vpop.f32.mrf.mxu0
    %328 = vmatprep.mubr.f32.mxu0 0.0
    %329 = vmatmul.mubr.f32.gmra.mxu0 %v205
    %v330 = vpop.f32.mrf.mxu0
    %v331 = vadd.f32 %v227, %v330
    %v332 = vpop.f32.mrf.mxu0
    %333 = vdwg.mxu0
    %334 = vmax.xlane.f32.xlu0 %v296
    %v335 = vpop.xlane.xlu0 %334
    %336 = vmax.xlane.f32.xlu0 %v301
    %v337 = vpop.xlane.xlu0 %336
    %338 = vmax.xlane.f32.xlu0 %v306
    %v339 = vpop.xlane.xlu0 %338
    %340 = vmax.xlane.f32.xlu0 %v311
    %v341 = vpop.xlane.xlu0 %340
    %342 = vmax.xlane.f32.xlu0 %v316
    %v343 = vpop.xlane.xlu0 %342
    %344 = vmax.xlane.f32.xlu0 %v321
    %v345 = vpop.xlane.xlu0 %344
    %346 = vmax.xlane.f32.xlu0 %v326
    %v347 = vpop.xlane.xlu0 %346
    %348 = vmax.xlane.f32.xlu0 %v331
    %v349 = vpop.xlane.xlu0 %348
    %v350 = vsub.f32 %v296, %v335
    %v351 = vsub.f32 %v301, %v337
    %v352 = vsub.f32 %v306, %v339
    %v353 = vsub.f32 %v311, %v341
    %v354 = vsub.f32 %v316, %v343
    %v355 = vsub.f32 %v321, %v345
    %v356 = vsub.f32 %v326, %v347
    %v357 = vsub.f32 %v331, %v349
    %v358 = vmul.f32 %v350, 1.442695
    %v359 = vpow.pop %v358
    %v360 = vmul.f32 %v351, 1.442695
    %v361 = vpow.pop %v360
    %v362 = vmul.f32 %v352, 1.442695
    %v363 = vpow.pop %v362
    %v364 = vmul.f32 %v353, 1.442695
    %v365 = vpow.pop %v364
    %v366 = vmul.f32 %v354, 1.442695
    %v367 = vpow.pop %v366
    %v368 = vmul.f32 %v355, 1.442695
    %v369 = vpow.pop %v368
    %v370 = vmul.f32 %v356, 1.442695
    %v371 = vpow.pop %v370
    %v372 = vmul.f32 %v357, 1.442695
    %v373 = vpow.pop %v372
    %374 = vadd.xlane.f32.xlu0 %v359
    %v375 = vpop.xlane.xlu0 %374
    %376 = vadd.xlane.f32.xlu0 %v361
    %v377 = vpop.xlane.xlu0 %376
    %378 = vadd.xlane.f32.xlu0 %v363
    %v379 = vpop.xlane.xlu0 %378
    %380 = vadd.xlane.f32.xlu0 %v365
    %v381 = vpop.xlane.xlu0 %380
    %382 = vadd.xlane.f32.xlu0 %v367
    %v383 = vpop.xlane.xlu0 %382
    %384 = vadd.xlane.f32.xlu0 %v369
    %v385 = vpop.xlane.xlu0 %384
    %386 = vadd.xlane.f32.xlu0 %v371
    %v387 = vpop.xlane.xlu0 %386
    %388 = vadd.xlane.f32.xlu0 %v373
    %v389 = vpop.xlane.xlu0 %388
    %v390 = vlog2.pop %v375
    %v391 = vmul.f32 %v390, 0.6931472
    %v392 = vlog2.pop %v377
    %v393 = vmul.f32 %v392, 0.6931472
    %v394 = vlog2.pop %v379
    %v395 = vmul.f32 %v394, 0.6931472
    %v396 = vlog2.pop %v381
    %v397 = vmul.f32 %v396, 0.6931472
    %v398 = vlog2.pop %v383
    %v399 = vmul.f32 %v398, 0.6931472
    %v400 = vlog2.pop %v385
    %v401 = vmul.f32 %v400, 0.6931472
    %v402 = vlog2.pop %v387
    %v403 = vmul.f32 %v402, 0.6931472
    %v404 = vlog2.pop %v389
    %v405 = vmul.f32 %v404, 0.6931472
    %v406 = vsub.f32 %v350, %v391
    %v407 = vsub.f32 %v351, %v393
    %v408 = vsub.f32 %v352, %v395
    %v409 = vsub.f32 %v353, %v397
    %v410 = vsub.f32 %v354, %v399
    %v411 = vsub.f32 %v355, %v401
    %v412 = vsub.f32 %v356, %v403
    %v413 = vsub.f32 %v357, %v405
    %414 = vst [vmem:[#allocation8] sm:$0xff] %v406
    %415 = vst [vmem:[#allocation8 + $0x8] sm:$0xff] %v407
    %416 = vst [vmem:[#allocation8 + $0x10] sm:$0xff] %v408
    %417 = vst [vmem:[#allocation8 + $0x18] sm:$0xff] %v409
    %418 = vst [vmem:[#allocation8 + $0x20] sm:$0xff] %v410
    %419 = vst [vmem:[#allocation8 + $0x28] sm:$0xff] %v411
    %420 = vst [vmem:[#allocation8 + $0x30] sm:$0xff] %v412
    %421 = vst [vmem:[#allocation8 + $0x38] sm:$0xff] %v413
    // Predicated region
    $region34: #{tpu_custom_call.1} parent=1 // pred_check
      _
    $region35: #{tpu_custom_call.1} parent=1 // pred_check_branch
      %423 = sbr.rel (0) target = $region37
    $region36: #{tpu_custom_call.1} parent=1 // pred_region
      %s425 = ssub.s32 1024, 1024
      %426 = vsyncadd [#allocation4], %s425
      %s427 = sshll.u32 [#allocation8], 4
      %s428 = int_to_ptr.vmem [resolvable:$true] %s427
      %433 = dma.vmem_to_hbm [thread:$0]  %s428, 1024, %s5, [#allocation4], 128, 128, 8
    $region37: #{tpu_custom_call.1} parent=1 // pred_fallthru
      _
    // Predicated region
    $region38: #{tpu_custom_call.1} parent=1 // pred_check
      _
    $region39: #{tpu_custom_call.1} parent=1 // pred_check_branch
      %435 = sbr.rel (0) target = $region41
    $region40: #{tpu_custom_call.1} parent=1 // pred_region
      %436 = dma.done [#allocation4], 1024
    $region41: #{tpu_custom_call.1} parent=1 // pred_fallthru
      _
    %437 = vsyncpa [#allocation3], 1
    %438 = vsyncpa [#allocation6], 1
    %439 = vsyncpa [#allocation4], 1

</llo_original>
